<compile_context>
chip_gen: v7x
topology: tpu7x:2x2x1
jax: 0.10.0
libtpu: 0.0.40
codegen_flags: <defaults>
</compile_context>

<pallas_src>
import functools

import jax
import jax.numpy as jnp
from jax import lax
from jax.experimental import pallas as pl
from jax.experimental.pallas import tpu as pltpu


_VMEM_LIMIT = 48 * 1024 * 1024  # <= v7x physical (64 MiB), > default on all gens.


# ---------------------------------------------------------------------------
# Linear kernels: y = x @ W_t (+ b).  x, W_t are bf16; accumulation in f32.
# ---------------------------------------------------------------------------
def _linear_resident_bias_kernel(x_ref, wt_ref, b_ref, o_ref):
    acc = jnp.dot(x_ref[...], wt_ref[...], preferred_element_type=jnp.float32)
    o_ref[...] = (acc + b_ref[...]).astype(o_ref.dtype)


def _linear_resident_nobias_kernel(x_ref, wt_ref, o_ref):
    o_ref[...] = jnp.dot(
        x_ref[...], wt_ref[...], preferred_element_type=jnp.float32
    ).astype(o_ref.dtype)


def _linear_tiled_bias_kernel(x_ref, wt_ref, b_ref, o_ref, acc_ref):
    k = pl.program_id(2)

    @pl.when(k == 0)
    def _():
        acc_ref[...] = jnp.zeros_like(acc_ref)

    acc_ref[...] += jnp.dot(x_ref[...], wt_ref[...],
                            preferred_element_type=jnp.float32)

    @pl.when(k == pl.num_programs(2) - 1)
    def _():
        # Bias added once at finalize, not on every K step.
        o_ref[...] = (acc_ref[...] + b_ref[...]).astype(o_ref.dtype)


def _linear_tiled_nobias_kernel(x_ref, wt_ref, o_ref, acc_ref):
    k = pl.program_id(2)

    @pl.when(k == 0)
    def _():
        acc_ref[...] = jnp.zeros_like(acc_ref)

    acc_ref[...] += jnp.dot(x_ref[...], wt_ref[...],
                            preferred_element_type=jnp.float32)

    @pl.when(k == pl.num_programs(2) - 1)
    def _():
        o_ref[...] = acc_ref[...].astype(o_ref.dtype)


def _pick_tile(dim, target, multiple):
    """Largest tile <= target dividing dim; prefers multiples of `multiple`.

    Never returns something larger than max(dim_if_small, target), so a
    non-divisible dimension can no longer silently produce a full-extent
    (VMEM-blowing) block.
    """
    if dim <= target:
        return dim
    best = 0
    t = multiple
    while t <= target:
        if dim % t == 0:
            best = t
        t += multiple
    if best:
        return best
    # No aligned divisor <= target: largest (possibly unaligned) divisor.
    for t in range(target, 0, -1):
        if dim % t == 0:
            return t
    return dim


def pallas_linear(x2d, w_t, b=None, *, out_dtype=jnp.float32,
                  tm_target=512, tn_target=512, tk_target=1024,
                  resident_weight_max_bytes=8 * 1024 * 1024):
    """y = x2d @ w_t (+ b).  x2d is (M, K) bf16, w_t pre-transposed (K, O) bf16."""
    M, K = x2d.shape
    K2, O = w_t.shape
    assert K == K2
    b2d = None if b is None else b.reshape(1, O).astype(jnp.float32)

    weight_bytes = K * O * w_t.dtype.itemsize
    if weight_bytes <= resident_weight_max_bytes:
        # Weight-resident path: 1-D grid over M, constant weight block index
        # (DMA'd from HBM once), x streamed once — minimal HBM traffic.
        tm = _pick_tile(M, tm_target, 8)
        in_specs = [pl.BlockSpec((tm, K), lambda i: (i, 0)),
                    pl.BlockSpec((K, O), lambda i: (0, 0))]
        operands = [x2d, w_t]
        if b2d is not None:
            in_specs.append(pl.BlockSpec((1, O), lambda i: (0, 0)))
            operands.append(b2d)
            kernel = _linear_resident_bias_kernel
        else:
            kernel = _linear_resident_nobias_kernel
        return pl.pallas_call(
            kernel,
            out_shape=jax.ShapeDtypeStruct((M, O), out_dtype),
            grid=(M // tm,),
            in_specs=in_specs,
            out_specs=pl.BlockSpec((tm, O), lambda i: (i, 0)),
            compiler_params=pltpu.CompilerParams(
                dimension_semantics=("parallel",),
                vmem_limit_bytes=_VMEM_LIMIT),
        )(*operands)

    # Fallback: 3-D tiled matmul with f32 VMEM accumulator over the K axis.
    tm = _pick_tile(M, tm_target, 8)
    tn = _pick_tile(O, tn_target, 128)
    tk = _pick_tile(K, tk_target, 128)
    grid = (M // tm, O // tn, K // tk)
    in_specs = [pl.BlockSpec((tm, tk), lambda i, j, k: (i, k)),
                pl.BlockSpec((tk, tn), lambda i, j, k: (k, j))]
    operands = [x2d, w_t]
    if b2d is not None:
        in_specs.append(pl.BlockSpec((1, tn), lambda i, j, k: (0, j)))
        operands.append(b2d)
        kernel = _linear_tiled_bias_kernel
    else:
        kernel = _linear_tiled_nobias_kernel
    return pl.pallas_call(
        kernel,
        out_shape=jax.ShapeDtypeStruct((M, O), out_dtype),
        grid=grid,
        in_specs=in_specs,
        out_specs=pl.BlockSpec((tm, tn), lambda i, j, k: (i, j)),
        scratch_shapes=[pltpu.VMEM((tm, tn), jnp.float32)],
        compiler_params=pltpu.CompilerParams(
            dimension_semantics=("parallel", "parallel", "arbitrary"),
            vmem_limit_bytes=_VMEM_LIMIT),
    )(*operands)


# ---------------------------------------------------------------------------
# Fused attention + output projection.  grid = (B, H); H is the reduction
# (accumulation) axis for the projected output.
#   q_ref/k_ref/v_ref : (N, D)  bf16   (scale already folded into W_q)
#   wo_ref            : (D, E)  bf16   (head h's slice of W_out^T)
#   o_ref             : (N, E)  f32    (constant block across h -> accumulator)
#   w_ref             : (N, N)  f32    (per-(b, h) softmax weights, returned)
#   acc_ref           : (N, E)  f32 VMEM scratch
# ---------------------------------------------------------------------------
def _attention_kernel(q_ref, k_ref, v_ref, wo_ref, o_ref, w_ref, acc_ref):
    h = pl.program_id(1)

    @pl.when(h == 0)
    def _():
        acc_ref[...] = jnp.zeros_like(acc_ref)

    q = q_ref[...]                                   # (N, D) bf16 (pre-scaled)
    k = k_ref[...]                                   # (N, D) bf16
    v = v_ref[...]                                   # (N, D) bf16
    # q @ k^T via contracting dims (no in-kernel transpose).
    s = lax.dot_general(q, k, (((1,), (1,)), ((), ())),
                        preferred_element_type=jnp.float32)      # (N, N) f32
    m = jnp.max(s, axis=-1, keepdims=True)
    e = jnp.exp(s - m)
    p = e / jnp.sum(e, axis=-1, keepdims=True)       # exact softmax (module output)
    w_ref[...] = p
    pv = jnp.dot(p.astype(jnp.bfloat16), v,
                 preferred_element_type=jnp.float32)              # (N, D) f32
    # Fused output projection: accumulate this head's contribution.
    acc_ref[...] += jnp.dot(pv.astype(jnp.bfloat16), wo_ref[...],
                            preferred_element_type=jnp.float32)   # (N, E) f32

    @pl.when(h == pl.num_programs(1) - 1)
    def _():
        o_ref[...] = acc_ref[...].astype(o_ref.dtype)


def fused_attention_outproj(qkv, wo_heads, num_heads, head_dim):
    """qkv: (B, N, 3E) bf16 laid out [q | k | v]; wo_heads: (H, D, E) bf16."""
    B, N, threeE = qkv.shape
    H, D = num_heads, head_dim
    E = H * D
    assert threeE == 3 * E

    out_shape = (jax.ShapeDtypeStruct((B, N, E), jnp.float32),
                 jax.ShapeDtypeStruct((B, H, N, N), jnp.float32))
    out_specs = (pl.BlockSpec((None, N, E), lambda b, h: (b, 0, 0)),
                 pl.BlockSpec((None, None, N, N), lambda b, h: (b, h, 0, 0)))
    wo_spec = pl.BlockSpec((None, D, E), lambda b, h: (h, 0, 0))

    if D % 128 == 0:
        # Lane-aligned heads: the BlockSpec DMA slices q/k/v for head h
        # straight out of the (B, N, 3E) slab — no relayout anywhere.
        q_spec = pl.BlockSpec((None, N, D), lambda b, h: (b, 0, h))
        k_spec = pl.BlockSpec((None, N, D), lambda b, h: (b, 0, H + h))
        v_spec = pl.BlockSpec((None, N, D), lambda b, h: (b, 0, 2 * H + h))
        in_specs = [q_spec, k_spec, v_spec, wo_spec]
        operands = (qkv, qkv, qkv, wo_heads)
    else:
        # D below the lane width: one XLA relayout to (B, H, N, D) so every
        # per-head kernel block is full-extent (no sub-128 in-kernel slicing).
        qkv5 = qkv.reshape(B, N, 3, H, D)
        q = jnp.transpose(qkv5[:, :, 0], (0, 2, 1, 3))
        k = jnp.transpose(qkv5[:, :, 1], (0, 2, 1, 3))
        v = jnp.transpose(qkv5[:, :, 2], (0, 2, 1, 3))
        spec = pl.BlockSpec((None, None, N, D), lambda b, h: (b, h, 0, 0))
        in_specs = [spec, spec, spec, wo_spec]
        operands = (q, k, v, wo_heads)

    return pl.pallas_call(
        _attention_kernel,
        out_shape=out_shape,
        grid=(B, H),
        in_specs=in_specs,
        out_specs=out_specs,
        scratch_shapes=[pltpu.VMEM((N, E), jnp.float32)],
        compiler_params=pltpu.CompilerParams(
            dimension_semantics=("parallel", "arbitrary"),
            vmem_limit_bytes=_VMEM_LIMIT),
    )(*operands)


# ---------------------------------------------------------------------------
# Module forward: MultiHeadSelfAttention(x, attn_mask) -> (out, weights)
# ---------------------------------------------------------------------------
def multi_head_self_attention(x, attn_mask, params, num_heads):
    # NOTE: exactly like the reference forward, attn_mask is built then never
    # applied to the attention logits — kept only for API parity.
    del attn_mask
    B, N, E = x.shape
    H = num_heads
    D = E // H
    scale = D ** (-0.5)

    # One-time weight prep (hoist to load time in deployment):
    #   * PyTorch nn.Linear weights are (O, K); feed the MXU (K, O) bf16.
    #   * Fold the softmax scale into the Q projection columns + bias (f32,
    #     before the bf16 cast) — zero runtime cost, replaces the per-head
    #     (N, N) score scaling.
    w_qkv_t = params["w_qkv"].T                      # (E, 3E) f32
    w_qkv_t = w_qkv_t.at[:, :E].multiply(scale)
    b_qkv = params["b_qkv"].at[:E].multiply(scale)   # (3E,)  f32
    wt_qkv = w_qkv_t.astype(jnp.bfloat16)
    wo_heads = params["w_out"].T.reshape(H, D, E).astype(jnp.bfloat16)

    # Pre-cast x once in the wrapper (halves its HBM->VMEM traffic).
    x_bf = x.astype(jnp.bfloat16).reshape(B * N, E)

    # QKV projection: (B*N, E) @ (E, 3E) + b -> (B*N, 3E), bf16 intermediate.
    qkv = pallas_linear(x_bf, wt_qkv, b_qkv, out_dtype=jnp.bfloat16)
    qkv = qkv.reshape(B, N, 3 * E)

    # Fused attention + output projection.  Dropout(p=0.0) is identity.
    out, weights = fused_attention_outproj(qkv, wo_heads, H, D)
    return out, weights


# ---------------------------------------------------------------------------
# Deterministic parameter init (shapes from nn.Linear in __init__).
# ---------------------------------------------------------------------------
def init_params(key, embed_dim):
    k1, k2, k3 = jax.random.split(key, 3)
    bound = 1.0 / (embed_dim ** 0.5)
    return {
        "w_qkv": jax.random.uniform(
            k1, (3 * embed_dim, embed_dim), jnp.float32, -bound, bound),
        "b_qkv": jax.random.uniform(
            k2, (3 * embed_dim,), jnp.float32, -bound, bound),
        "w_out": jax.random.uniform(
            k3, (embed_dim, embed_dim), jnp.float32, -bound, bound),
    }


# Pure-JAX f32 reference of the PyTorch forward (for correctness checking).
def _reference_forward(x, params, num_heads):
    B, N, E = x.shape
    H = num_heads
    D = E // H
    qkv = x @ params["w_qkv"].T + params["b_qkv"]
    qkv = qkv.reshape(B, N, 3, H, D)
    q = jnp.transpose(qkv[:, :, 0], (0, 2, 1, 3))
    k = jnp.transpose(qkv[:, :, 1], (0, 2, 1, 3))
    v = jnp.transpose(qkv[:, :, 2], (0, 2, 1, 3))
    s = jnp.einsum("bhqd,bhkd->bhqk", q, k) * (D ** -0.5)
    w = jax.nn.softmax(s, axis=-1)
    o = jnp.einsum("bhqk,bhkd->bhqd", w, v)
    o = jnp.transpose(o, (0, 2, 1, 3)).reshape(B, N, E)
    return o @ params["w_out"].T, w


if __name__ == "__main__":
    def run_case(B, N, E, H, key):
        kp, kx = jax.random.split(key)
        params = init_params(kp, E)
        x = jax.random.normal(kx, (B, N, E), jnp.float32)
        attn_mask = jnp.zeros((B, N, N), jnp.float32)   # unused, API parity only
        fwd = jax.jit(functools.partial(multi_head_self_attention, num_heads=H))
        out, weights = fwd(x, attn_mask, params)
        jax.block_until_ready((out, weights))
        assert out.shape == (B, N, E)
        assert weights.shape == (B, H, N, N)
        # Exact softmax normalization -> rows sum to 1 tightly.
        assert bool(jnp.allclose(jnp.sum(weights, axis=-1), 1.0, atol=1e-4))
        out_ref, w_ref = _reference_forward(x, params, H)
        assert float(jnp.max(jnp.abs(weights - w_ref))) < 3e-2   # bf16 MXU path
        assert float(jnp.max(jnp.abs(out - out_ref))) < 8e-2

    key = jax.random.PRNGKey(0)
    k1, k2, k3 = jax.random.split(key, 3)
    run_case(2, 8, 32, 4, k1)     # D=8   -> relayout path for per-head blocks
    run_case(2, 16, 512, 4, k2)   # D=128 -> direct DMA-sliced QKV slab path

    # Exercise the tiled (non-weight-resident) linear fallback + nobias path.
    M, K, O = 32, 256, 384
    ka, kb, kc = jax.random.split(k3, 3)
    a = jax.random.normal(ka, (M, K), jnp.float32).astype(jnp.bfloat16)
    w = (jax.random.normal(kb, (K, O), jnp.float32) * 0.05).astype(jnp.bfloat16)
    bias = jax.random.normal(kc, (O,), jnp.float32)
    y_ref = a.astype(jnp.float32) @ w.astype(jnp.float32) + bias
    y_tiled = pallas_linear(a, w, bias, out_dtype=jnp.float32,
                            resident_weight_max_bytes=0,
                            tn_target=128, tk_target=128)
    y_res_nb = pallas_linear(a, w, None, out_dtype=jnp.float32)
    jax.block_until_ready((y_tiled, y_res_nb))
    assert float(jnp.max(jnp.abs(y_tiled - y_ref))) < 1e-3
    assert float(jnp.max(jnp.abs(y_res_nb - (y_ref - bias)))) < 1e-3

    print("KERNEL_OK")
</pallas_src>

<mosaic_0001>
module attributes {stable_mosaic.version = 11 : i64} {
  func.func @_linear_resident_bias_kernel(%arg0: i32, %arg1: memref<16x32xbf16, #tpu.memory_space<vmem>>, %arg2: memref<32x96xbf16, #tpu.memory_space<vmem>>, %arg3: memref<1x96xf32, #tpu.memory_space<vmem>>, %arg4: memref<16x96xbf16, #tpu.memory_space<vmem>>) attributes {dimension_semantics = [#tpu.dimension_semantics<parallel>], iteration_bounds = array<i64: 1>, scalar_prefetch = 0 : i64, scratch_operands = 0 : i64, tpu.core_type = #tpu.core_type<tc>, window_params = [{transform_indices = @transform_0, window_bounds = array<i64: 16, 32>}, {pipeline_mode = #tpu.pipeline_mode<synchronous>, transform_indices = @transform_1, window_bounds = array<i64: 32, 96>}, {pipeline_mode = #tpu.pipeline_mode<synchronous>, transform_indices = @transform_2, window_bounds = array<i64: 1, 96>}, {transform_indices = @transform_3, window_bounds = array<i64: 16, 96>}]} {
    %c0 = arith.constant 0 : index
    %c0_0 = arith.constant 0 : index
    %0 = vector.load %arg1[%c0, %c0_0] : memref<16x32xbf16, #tpu.memory_space<vmem>>, vector<16x32xbf16>
    %c0_1 = arith.constant 0 : index
    %c0_2 = arith.constant 0 : index
    %1 = vector.load %arg2[%c0_1, %c0_2] : memref<32x96xbf16, #tpu.memory_space<vmem>>, vector<32x96xbf16>
    %cst = arith.constant dense<0.000000e+00> : vector<16x96xf32>
    %2 = tpu.matmul %0, %1, %cst {dimension_numbers = #tpu.dot_dimension_numbers<[1], [0], [0], [1], [0, 0, 1, 1], [], []>} : vector<16x32xbf16>, vector<32x96xbf16>, vector<16x96xf32> -> vector<16x96xf32>
    %c0_3 = arith.constant 0 : index
    %c0_4 = arith.constant 0 : index
    %3 = vector.load %arg3[%c0_3, %c0_4] : memref<1x96xf32, #tpu.memory_space<vmem>>, vector<1x96xf32>
    %4 = vector.broadcast %3 : vector<1x96xf32> to vector<16x96xf32>
    %5 = arith.addf %2, %4 : vector<16x96xf32>
    %6 = arith.truncf %5 : vector<16x96xf32> to vector<16x96xbf16>
    %c0_5 = arith.constant 0 : index
    %c0_6 = arith.constant 0 : index
    %7 = vector.load %arg4[%c0_5, %c0_6] : memref<16x96xbf16, #tpu.memory_space<vmem>>, vector<16x96xbf16>
    tpu.vector_store %arg4[%c0_5, %c0_6], %6 {strides = array<i32>} : memref<16x96xbf16, #tpu.memory_space<vmem>>, vector<16x96xbf16>,
    return
  }
  func.func @transform_0(%arg0: i32) -> (i32, i32) {
    %c0_i32 = arith.constant 0 : i32
    %c0_i32_0 = arith.constant 0 : i32
    return %arg0, %c0_i32 : i32, i32
  }
  func.func @transform_1(%arg0: i32) -> (i32, i32) {
    %c0_i32 = arith.constant 0 : i32
    %c0_i32_0 = arith.constant 0 : i32
    %c0_i32_1 = arith.constant 0 : i32
    return %c0_i32, %c0_i32_0 : i32, i32
  }
  func.func @transform_2(%arg0: i32) -> (i32, i32) {
    %c0_i32 = arith.constant 0 : i32
    %c0_i32_0 = arith.constant 0 : i32
    %c0_i32_1 = arith.constant 0 : i32
    return %c0_i32, %c0_i32_0 : i32, i32
  }
  func.func @transform_3(%arg0: i32) -> (i32, i32) {
    %c0_i32 = arith.constant 0 : i32
    %c0_i32_0 = arith.constant 0 : i32
    return %arg0, %c0_i32 : i32, i32
  }
}

module attributes {stable_mosaic.version = 11 : i64} {
  func.func @_attention_kernel(%arg0: i32, %arg1: i32, %arg2: memref<1x1x8x8xbf16, #tpu.memory_space<vmem>>, %arg3: memref<1x1x8x8xbf16, #tpu.memory_space<vmem>>, %arg4: memref<1x1x8x8xbf16, #tpu.memory_space<vmem>>, %arg5: memref<1x8x32xbf16, #tpu.memory_space<vmem>>, %arg6: memref<1x8x32xf32, #tpu.memory_space<vmem>>, %arg7: memref<1x1x8x8xf32, #tpu.memory_space<vmem>>, %arg8: memref<8x32xf32, #tpu.memory_space<vmem>>) attributes {dimension_semantics = [#tpu.dimension_semantics<parallel>, #tpu.dimension_semantics<arbitrary>], iteration_bounds = array<i64: 2, 4>, scalar_prefetch = 0 : i64, scratch_operands = 1 : i64, tpu.core_type = #tpu.core_type<tc>, window_params = [{transform_indices = @transform_0, window_bounds = array<i64: 1, 1, 8, 8>}, {transform_indices = @transform_1, window_bounds = array<i64: 1, 1, 8, 8>}, {transform_indices = @transform_2, window_bounds = array<i64: 1, 1, 8, 8>}, {transform_indices = @transform_3, window_bounds = array<i64: 1, 8, 32>}, {transform_indices = @transform_4, window_bounds = array<i64: 1, 8, 32>}, {transform_indices = @transform_5, window_bounds = array<i64: 1, 1, 8, 8>}]} {
    %c0_i32 = arith.constant 0 : i32
    %0 = arith.cmpi eq, %arg1, %c0_i32 : i32
    %1 = arith.extui %0 : i1 to i32
    %c0_i32_0 = arith.constant 0 : i32
    %2 = arith.cmpi ne, %1, %c0_i32_0 : i32
    scf.if %2 {
      %cst_28 = arith.constant 0.000000e+00 : f32
      %34 = vector.broadcast %cst_28 : f32 to vector<8x32xf32>
      %c0_29 = arith.constant 0 : index
      %c0_30 = arith.constant 0 : index
      %35 = vector.load %arg8[%c0_29, %c0_30] : memref<8x32xf32, #tpu.memory_space<vmem>>, vector<8x32xf32>
      tpu.vector_store %arg8[%c0_29, %c0_30], %34 {strides = array<i32>} : memref<8x32xf32, #tpu.memory_space<vmem>>, vector<8x32xf32>,
    } else {
    }
    %c0 = arith.constant 0 : index
    %c0_1 = arith.constant 0 : index
    %c0_2 = arith.constant 0 : index
    %c0_3 = arith.constant 0 : index
    %3 = vector.load %arg2[%c0, %c0_1, %c0_2, %c0_3] : memref<1x1x8x8xbf16, #tpu.memory_space<vmem>>, vector<1x1x8x8xbf16>
    %4 = vector.shape_cast %3 : vector<1x1x8x8xbf16> to vector<8x8xbf16>
    %c0_4 = arith.constant 0 : index
    %c0_5 = arith.constant 0 : index
    %c0_6 = arith.constant 0 : index
    %c0_7 = arith.constant 0 : index
    %5 = vector.load %arg3[%c0_4, %c0_5, %c0_6, %c0_7] : memref<1x1x8x8xbf16, #tpu.memory_space<vmem>>, vector<1x1x8x8xbf16>
    %6 = vector.shape_cast %5 : vector<1x1x8x8xbf16> to vector<8x8xbf16>
    %c0_8 = arith.constant 0 : index
    %c0_9 = arith.constant 0 : index
    %c0_10 = arith.constant 0 : index
    %c0_11 = arith.constant 0 : index
    %7 = vector.load %arg4[%c0_8, %c0_9, %c0_10, %c0_11] : memref<1x1x8x8xbf16, #tpu.memory_space<vmem>>, vector<1x1x8x8xbf16>
    %8 = vector.shape_cast %7 : vector<1x1x8x8xbf16> to vector<8x8xbf16>
    %cst = arith.constant dense<0.000000e+00> : vector<8x8xf32>
    %9 = tpu.matmul %4, %6, %cst {dimension_numbers = #tpu.dot_dimension_numbers<[1], [1], [0], [0], [0, 0, 1, 0], [], []>} : vector<8x8xbf16>, vector<8x8xbf16>, vector<8x8xf32> -> vector<8x8xf32>
    %cst_12 = arith.constant dense<0xFF800000> : vector<8xf32>
    %10 = vector.multi_reduction <maximumf>, %9, %cst_12 [1] : vector<8x8xf32> to vector<8xf32>
    %11 = vector.shape_cast %10 : vector<8xf32> to vector<8x1xf32>
    %12 = vector.broadcast %11 : vector<8x1xf32> to vector<8x8xf32>
    %13 = arith.subf %9, %12 : vector<8x8xf32>
    %14 = math.exp %13 : vector<8x8xf32>
    %cst_13 = arith.constant dense<0.000000e+00> : vector<8xf32>
    %15 = vector.multi_reduction <add>, %14, %cst_13 [1] : vector<8x8xf32> to vector<8xf32>
    %16 = vector.shape_cast %15 : vector<8xf32> to vector<8x1xf32>
    %17 = vector.broadcast %16 : vector<8x1xf32> to vector<8x8xf32>
    %18 = arith.divf %14, %17 : vector<8x8xf32>
    %c0_14 = arith.constant 0 : index
    %c0_15 = arith.constant 0 : index
    %c0_16 = arith.constant 0 : index
    %c0_17 = arith.constant 0 : index
    %19 = vector.load %arg7[%c0_14, %c0_15, %c0_16, %c0_17] : memref<1x1x8x8xf32, #tpu.memory_space<vmem>>, vector<1x1x8x8xf32>
    %20 = vector.shape_cast %19 : vector<1x1x8x8xf32> to vector<8x8xf32>
    %21 = vector.shape_cast %18 : vector<8x8xf32> to vector<1x1x8x8xf32>
    tpu.vector_store %arg7[%c0_14, %c0_15, %c0_16, %c0_17], %21 {strides = array<i32>} : memref<1x1x8x8xf32, #tpu.memory_space<vmem>>, vector<1x1x8x8xf32>,
    %22 = arith.truncf %18 : vector<8x8xf32> to vector<8x8xbf16>
    %cst_18 = arith.constant dense<0.000000e+00> : vector<8x8xf32>
    %23 = tpu.matmul %22, %8, %cst_18 {dimension_numbers = #tpu.dot_dimension_numbers<[1], [0], [0], [1], [0, 0, 1, 1], [], []>} : vector<8x8xbf16>, vector<8x8xbf16>, vector<8x8xf32> -> vector<8x8xf32>
    %c0_19 = arith.constant 0 : index
    %c0_20 = arith.constant 0 : index
    %24 = vector.load %arg8[%c0_19, %c0_20] : memref<8x32xf32, #tpu.memory_space<vmem>>, vector<8x32xf32>
    %25 = arith.truncf %23 : vector<8x8xf32> to vector<8x8xbf16>
    %c0_21 = arith.constant 0 : index
    %c0_22 = arith.constant 0 : index
    %c0_23 = arith.constant 0 : index
    %26 = vector.load %arg5[%c0_21, %c0_22, %c0_23] : memref<1x8x32xbf16, #tpu.memory_space<vmem>>, vector<1x8x32xbf16>
    %27 = vector.shape_cast %26 : vector<1x8x32xbf16> to vector<8x32xbf16>
    %cst_24 = arith.constant dense<0.000000e+00> : vector<8x32xf32>
    %28 = tpu.matmul %25, %27, %cst_24 {dimension_numbers = #tpu.dot_dimension_numbers<[1], [0], [0], [1], [0, 0, 1, 1], [], []>} : vector<8x8xbf16>, vector<8x32xbf16>, vector<8x32xf32> -> vector<8x32xf32>
    %29 = arith.addf %24, %28 : vector<8x32xf32>
    %c0_25 = arith.constant 0 : index
    %c0_26 = arith.constant 0 : index
    %30 = vector.load %arg8[%c0_25, %c0_26] : memref<8x32xf32, #tpu.memory_space<vmem>>, vector<8x32xf32>
    tpu.vector_store %arg8[%c0_25, %c0_26], %29 {strides = array<i32>} : memref<8x32xf32, #tpu.memory_space<vmem>>, vector<8x32xf32>,
    %c3_i32 = arith.constant 3 : i32
    %31 = arith.cmpi eq, %arg1, %c3_i32 : i32
    %32 = arith.extui %31 : i1 to i32
    %c0_i32_27 = arith.constant 0 : i32
    %33 = arith.cmpi ne, %32, %c0_i32_27 : i32
    scf.if %33 {
      %c0_28 = arith.constant 0 : index
      %c0_29 = arith.constant 0 : index
      %34 = vector.load %arg8[%c0_28, %c0_29] : memref<8x32xf32, #tpu.memory_space<vmem>>, vector<8x32xf32>
      %c0_30 = arith.constant 0 : index
      %c0_31 = arith.constant 0 : index
      %c0_32 = arith.constant 0 : index
      %35 = vector.load %arg6[%c0_30, %c0_31, %c0_32] : memref<1x8x32xf32, #tpu.memory_space<vmem>>, vector<1x8x32xf32>
      %36 = vector.shape_cast %35 : vector<1x8x32xf32> to vector<8x32xf32>
      %37 = vector.shape_cast %34 : vector<8x32xf32> to vector<1x8x32xf32>
      tpu.vector_store %arg6[%c0_30, %c0_31, %c0_32], %37 {strides = array<i32>} : memref<1x8x32xf32, #tpu.memory_space<vmem>>, vector<1x8x32xf32>,
    } else {
    }
    return
  }
  func.func @transform_0(%arg0: i32, %arg1: i32) -> (i32, i32, i32, i32) {
    %c0_i32 = arith.constant 0 : i32
    %c0_i32_0 = arith.constant 0 : i32
    %c0_i32_1 = arith.constant 0 : i32
    return %arg0, %arg1, %c0_i32, %c0_i32_0 : i32, i32, i32, i32
  }
  func.func @transform_1(%arg0: i32, %arg1: i32) -> (i32, i32, i32, i32) {
    %c0_i32 = arith.constant 0 : i32
    %c0_i32_0 = arith.constant 0 : i32
    %c0_i32_1 = arith.constant 0 : i32
    return %arg0, %arg1, %c0_i32, %c0_i32_0 : i32, i32, i32, i32
  }
  func.func @transform_2(%arg0: i32, %arg1: i32) -> (i32, i32, i32, i32) {
    %c0_i32 = arith.constant 0 : i32
    %c0_i32_0 = arith.constant 0 : i32
    %c0_i32_1 = arith.constant 0 : i32
    return %arg0, %arg1, %c0_i32, %c0_i32_0 : i32, i32, i32, i32
  }
  func.func @transform_3(%arg0: i32, %arg1: i32) -> (i32, i32, i32) {
    %c0_i32 = arith.constant 0 : i32
    %c0_i32_0 = arith.constant 0 : i32
    %c0_i32_1 = arith.constant 0 : i32
    return %arg1, %c0_i32, %c0_i32_0 : i32, i32, i32
  }
  func.func @transform_4(%arg0: i32, %arg1: i32) -> (i32, i32, i32) {
    %c0_i32 = arith.constant 0 : i32
    %c0_i32_0 = arith.constant 0 : i32
    %c0_i32_1 = arith.constant 0 : i32
    return %arg0, %c0_i32, %c0_i32_0 : i32, i32, i32
  }
  func.func @transform_5(%arg0: i32, %arg1: i32) -> (i32, i32, i32, i32) {
    %c0_i32 = arith.constant 0 : i32
    %c0_i32_0 = arith.constant 0 : i32
    %c0_i32_1 = arith.constant 0 : i32
    return %arg0, %arg1, %c0_i32, %c0_i32_0 : i32, i32, i32, i32
  }
}

</mosaic_0001>

<llo_original>
// kernel: multi_head_self_attention.2
$region0: #{multi_head_self_attention.2}
  #allocation0 [shape = 'u32[]', space=smem, size = 0x4, offset = 0x4, fixed_abs, tag = 'smem constant byte address 0x4 - core index']
  #allocation1 [shape = 'u32[144,128]{1,0:T(1,128)}', space=vmem, size = 0x12000, scoped, tag = 'internal scratch']
  %s0 = inlined_call_operand.vmem [shape: bf16[16,32], index: 0, kind: input, shape index: {}]
  %s1 = inlined_call_operand.vmem [shape: bf16[32,96], index: 1, kind: input, shape index: {}]
  %s2 = inlined_call_operand.vmem [shape: f32[1,96], index: 2, kind: input, shape index: {}]
  %s3 = inlined_call_operand.vmem [shape: bf16[16,96], index: 3, kind: output, shape index: {}]
  %s4 = sld [smem:[#allocation0]]
  $region22: #{multi_head_self_attention.2} parent=0
    _
  %s6 = ssub.s32 1, %s4
  %s7 = scalar_select 0, %s6, %s4
  // Predicated region
  $region2: #{multi_head_self_attention.2} parent=0 // pred_check
    _
  $region3: #{multi_head_self_attention.2} parent=0 // pred_check_branch
    %9 = sbr.rel (0) target = $region5
  $region4: #{multi_head_self_attention.2} parent=0 // pred_region
    _
  $region5: #{multi_head_self_attention.2} parent=0 // pred_fallthru
    _
  // Predicated region
  $region6: #{multi_head_self_attention.2} parent=0 // pred_check
    _
  $region7: #{multi_head_self_attention.2} parent=0 // pred_check_branch
    %11 = sbr.rel (0) target = $region9
  $region8: #{multi_head_self_attention.2} parent=0 // pred_region
    _
  $region9: #{multi_head_self_attention.2} parent=0 // pred_fallthru
    _
  // Predicated region
  $region10: #{multi_head_self_attention.2} parent=0 // pred_check
    _
  $region11: #{multi_head_self_attention.2} parent=0 // pred_check_branch
    %13 = sbr.rel (0) target = $region13
  $region12: #{multi_head_self_attention.2} parent=0 // pred_region
    _
  $region13: #{multi_head_self_attention.2} parent=0 // pred_fallthru
    _
  %v15 = vld [vmem:[%s0] sm:$0xf]
  %v16 = vld [vmem:[%s0 + $0x4] sm:$0xf]
  %v17 = vld [vmem:[%s1] sm:$0xf]
  %v18 = vld [vmem:[%s1 + $0x4] sm:$0xf]
  %v19 = vld [vmem:[%s1 + $0x8] sm:$0xf]
  %v20 = vld [vmem:[%s1 + $0xc] sm:$0xf]
  %v21 = vld [vmem:[%s2] sm:$0x1]
  %v23 = vlaneseq
  %v24 = vshrl.u32 %v23, 7
  %v25 = vsub.s32 0, %v24
  %v26 = vrot.slane %v21, %v25
  %v30 = vunpack.c.l.b16 %v15
  %v31 = vunpack.c.l.b16 %v16
  %v32 = vpack.c.b16 %v31, %v30
  %v37 = vunpack.c.l.b16 %v17
  %v38 = vunpack.c.l.b16 %v18
  %v39 = vunpack.c.l.b16 %v19
  %v40 = vunpack.c.l.b16 %v20
  %v41 = vpack.c.b16 %v38, %v37
  %v42 = vpack.c.b16 %v40, %v39
  %vm45 = vcmask 261120
  %v47 = vsel %vm45, %v32, 0
  %49 = vmatprep.subr.bf16.mxu0 0
  %50 = vmatpush1.bf16.msra.mxu0 %v41
  %51 = vmatprep.subr.bf16.mxu0 0
  %52 = vmatpush1.bf16.msra.mxu0 %v42
  %53 = vmatprep.subr.bf16.mxu0 0
  %54 = vmatpush1.bf16.msra.mxu0 0
  %55 = vmatprep.subr.bf16.mxu0 0
  %56 = vmatpush1.bf16.msra.mxu0 0
  %57 = vmatprep.subr.bf16.mxu0 0
  %58 = vmatpush1.bf16.msra.mxu0 0
  %59 = vmatprep.subr.bf16.mxu0 0
  %60 = vmatpush1.bf16.msra.mxu0 0
  %61 = vmatprep.subr.bf16.mxu0 0
  %62 = vmatpush1.bf16.msra.mxu0 0
  %63 = vmatprep.subr.bf16.mxu0 0
  %64 = vmatpush1.bf16.msra.mxu0 0
  %65 = vmatprep.subr.bf16.mxu0 0
  %66 = vmatpush1.bf16.msra.mxu0 0
  %67 = vmatprep.subr.bf16.mxu0 0
  %68 = vmatpush1.bf16.msra.mxu0 0
  %69 = vmatprep.subr.bf16.mxu0 0
  %70 = vmatpush1.bf16.msra.mxu0 0
  %71 = vmatprep.subr.bf16.mxu0 0
  %72 = vmatpush1.bf16.msra.mxu0 0
  %73 = vmatprep.subr.bf16.mxu0 0
  %74 = vmatpush1.bf16.msra.mxu0 0
  %75 = vmatprep.subr.bf16.mxu0 0
  %76 = vmatpush1.bf16.msra.mxu0 0
  %77 = vmatprep.subr.bf16.mxu0 0
  %78 = vmatpush1.bf16.msra.mxu0 0
  %79 = vmatprep.subr.bf16.mxu0 0
  %80 = vmatpush1.bf16.msra.mxu0 0
  %81 = vmatprep.mubr.bf16.mxu0 0
  %82 = vmatmul.mubr.bf16.gmra.mrb[0].mxu0 %v47
  %v83 = vpop.f32.mrb[0].mxu0
  %v84 = vadd.f32 %v26, %v83
  %v85 = vpop.f32.mrb[0].mxu0
  %v86 = vpop.f32.mrb[0].mxu0
  %v87 = vadd.f32 %v26, %v86
  %v88 = vpop.f32.mrb[0].mxu0
  %89 = vdwg.mxu0
  %v90 = vpack.c.bf16 %v87, %v84
  %v92 = vunpack.c.l.b16 %v90
  %v93 = vunpack.c.h.b16 %v90
  %v94 = vpack.c.b16 %v92, %v92
  %v95 = vpack.c.b16 %v93, %v93
  %vm98 = vcmask 781312
  %99 = vst.msk [vmem:[%s3] sm:$0xf] %vm98, %v94
  %100 = vst.msk [vmem:[%s3 + $0x4] sm:$0xf] %vm98, %v95
  // Predicated region
  $region14: #{multi_head_self_attention.2} parent=0 // pred_check
    _
  $region15: #{multi_head_self_attention.2} parent=0 // pred_check_branch
    %102 = sbr.rel (0) target = $region17
  $region16: #{multi_head_self_attention.2} parent=0 // pred_region
    _
  $region17: #{multi_head_self_attention.2} parent=0 // pred_fallthru
    _
  // Predicated region
  $region18: #{multi_head_self_attention.2} parent=0 // pred_check
    _
  $region19: #{multi_head_self_attention.2} parent=0 // pred_check_branch
    %104 = sbr.rel (0) target = $region21
  $region20: #{multi_head_self_attention.2} parent=0 // pred_region
    _
  $region21: #{multi_head_self_attention.2} parent=0 // pred_fallthru
    _

// kernel: multi_head_self_attention.3
$region0: #{multi_head_self_attention.3}
  #allocation0 [shape = 'u32[]', space=smem, size = 0x4, offset = 0x4, fixed_abs, tag = 'smem constant byte address 0x4 - core index']
  #allocation1 [shape = 'u32[144,128]{1,0:T(1,128)}', space=vmem, size = 0x12000, scoped, tag = 'internal scratch']
  #allocation2 [shape = 'f32[8,32]{1,0:T(8,128)}', space=vmem, size = 0x1000, scoped, tag = 'scratch operand']
  %s0 = inlined_call_operand.vmem [shape: bf16[2,4,8,8], index: 0, kind: input, shape index: {}]
  %s1 = inlined_call_operand.vmem [shape: bf16[2,4,8,8], index: 1, kind: input, shape index: {}]
  %s2 = inlined_call_operand.vmem [shape: bf16[2,4,8,8], index: 2, kind: input, shape index: {}]
  %s3 = inlined_call_operand.vmem [shape: bf16[4,8,32], index: 3, kind: input, shape index: {}]
  %s4 = inlined_call_operand.hbm [shape: f32[2,8,32], index: 4, kind: output, shape index: {0}]
  %s5 = inlined_call_operand.hbm [shape: f32[2,4,8,8], index: 5, kind: output, shape index: {1}]
  %6 = xla_tuple %s4, %s5
  %s7 = sld [smem:[#allocation0]]
  $region65: #{multi_head_self_attention.3} parent=0
    _
  %s9 = ssub.s32 1, %s7
  %s10 = scalar_select 0, %s9, %s7
  $region1: #{multi_head_self_attention.3} parent=0
    #allocation3 [shape = 'u8[8192]{0}', space=vmem, size = 0x2000, scoped, tag = 'output window, operand 0']
    #allocation4 [shape = 's32[2]{0}', space=sflag, size = 0x8, scoped, tag = 'scoped memory for multi_head_self_attention.3']
    #allocation5 [shape = 'u8[8192]{0}', space=vmem, size = 0x2000, scoped, tag = 'output window, operand 1']
    #allocation6 [shape = 's32[2]{0}', space=sflag, size = 0x8, scoped, tag = 'scoped memory for multi_head_self_attention.3']
    %11 = vsyncpa [#allocation4], 0
    %s12 = scalar_lea.sflag [#allocation4], 1
    %13 = vsyncpa %s12, 0
    %14 = vsyncpa [#allocation6], 0
    %s15 = scalar_lea.sflag [#allocation6], 1
    %16 = vsyncpa %s15, 0
    loop: start=0, step=1, limit=10
    $region2: #{multi_head_self_attention.3} parent=1 // loop_pre_header
      _
    $region3: #{multi_head_self_attention.3} parent=1 // loop_header
      %s18 = sphi 0, %s22
      %p19 = scmp.ge.s32.totalorder %s18, 10
      %s25 = sphi 0, %s37
      %s26 = sphi 0, %s33
      %s27 = sphi 0, %s25
      %s28 = sphi 0, %s26
      %s29 = sphi 0, %s27
      %s30 = sphi 0, %s28
      %s42 = sphi 0, %s44
      %s45 = sphi 0, %s42
      %s46 = sphi 0, %s45
      %s62 = sphi 0, %s46
      %s70 = sphi 0, %s72
      %s73 = sphi 0, %s70
      %s74 = sphi 0, %s73
      %s90 = sphi 0, %s74
      %s98 = sphi 0, %s100
      %s101 = sphi 0, %s98
      %s102 = sphi 0, %s101
      %s118 = sphi 0, %s102
      %s124 = sphi 0, %s126
      %s127 = sphi 0, %s124
      %s128 = sphi 0, %s127
      %s144 = sphi 0, %s128
      %s150 = sphi 0, %s152
      %s153 = sphi 0, %s150
      %s154 = sphi 0, %s153
      %s170 = sphi 0, %s154
      %s178 = sphi 0, %s180
      %s181 = sphi 0, %s178
      %s182 = sphi 0, %s181
      %s198 = sphi 0, %s182
    $region4: #{multi_head_self_attention.3} parent=1 // loop_header_branch
      %21 = sbr.rel (%p19) target = $region8
    $region5: #{multi_head_self_attention.3} parent=1 // loop_body
      %s23 = ssub.s32 %s18, 1
      %s24 = ssub.s32 %s18, 2
      %s31 = sadd.s32 1, %s26
      %p32 = scmp.ge.s32.totalorder %s31, 4
      %s33 = scalar_select %p32, 0, %s31
      %s34 = sadd.s32 1, %s25
      %s35 = scalar_select %p32, %s34, %s25
      %p36 = scmp.ge.s32.totalorder %s35, 2
      %s37 = scalar_select %p36, 0, %s35
      %s38 = ssub.s32 %s25, %s37
      %s39 = ssub.s32 %s26, %s33
      %s40 = sor.u32 %s38, %s39
      %p41 = scmp.eq.s32.totalorder %s40, 0
      %s43 = sadd.s32 %s42, 1
      %s44 = scalar_select %p41, %s42, %s43
      %p47 = pneg %p41
      %p48 = scmp.eq.s32.totalorder %s18, 7
      %p49 = por %p47, %p48
      %p50 = scmp.ne.s32.totalorder %s42, %s45
      %p51 = scmp.eq.s32.totalorder %s18, 0
      %p52 = por %p50, %p51
      %p53 = scmp.ne.s32.totalorder %s42, %s45
      %p54 = scmp.eq.s32.totalorder %s23, 7
      %p55 = por %p53, %p54
      %p56 = scmp.ne.s32.totalorder %s45, %s46
      %p57 = scmp.eq.s32.totalorder %s23, 0
      %p58 = por %p56, %p57
      %p59 = scmp.ne.s32.totalorder %s45, %s46
      %p60 = scmp.eq.s32.totalorder %s24, 7
      %p61 = por %p59, %p60
      %p63 = scmp.ne.s32.totalorder %s46, %s62
      %p64 = scmp.eq.s32.totalorder %s24, 0
      %p65 = por %p63, %p64
      %s66 = ssub.s32 %s25, %s37
      %s67 = ssub.s32 %s26, %s33
      %s68 = sor.u32 %s66, %s67
      %p69 = scmp.eq.s32.totalorder %s68, 0
      %s71 = sadd.s32 %s70, 1
      %s72 = scalar_select %p69, %s70, %s71
      %p75 = pneg %p69
      %p76 = scmp.eq.s32.totalorder %s18, 7
      %p77 = por %p75, %p76
      %p78 = scmp.ne.s32.totalorder %s70, %s73
      %p79 = scmp.eq.s32.totalorder %s18, 0
      %p80 = por %p78, %p79
      %p81 = scmp.ne.s32.totalorder %s70, %s73
      %p82 = scmp.eq.s32.totalorder %s23, 7
      %p83 = por %p81, %p82
      %p84 = scmp.ne.s32.totalorder %s73, %s74
      %p85 = scmp.eq.s32.totalorder %s23, 0
      %p86 = por %p84, %p85
      %p87 = scmp.ne.s32.totalorder %s73, %s74
      %p88 = scmp.eq.s32.totalorder %s24, 7
      %p89 = por %p87, %p88
      %p91 = scmp.ne.s32.totalorder %s74, %s90
      %p92 = scmp.eq.s32.totalorder %s24, 0
      %p93 = por %p91, %p92
      %s94 = ssub.s32 %s25, %s37
      %s95 = ssub.s32 %s26, %s33
      %s96 = sor.u32 %s94, %s95
      %p97 = scmp.eq.s32.totalorder %s96, 0
      %s99 = sadd.s32 %s98, 1
      %s100 = scalar_select %p97, %s98, %s99
      %p103 = pneg %p97
      %p104 = scmp.eq.s32.totalorder %s18, 7
      %p105 = por %p103, %p104
      %p106 = scmp.ne.s32.totalorder %s98, %s101
      %p107 = scmp.eq.s32.totalorder %s18, 0
      %p108 = por %p106, %p107
      %p109 = scmp.ne.s32.totalorder %s98, %s101
      %p110 = scmp.eq.s32.totalorder %s23, 7
      %p111 = por %p109, %p110
      %p112 = scmp.ne.s32.totalorder %s101, %s102
      %p113 = scmp.eq.s32.totalorder %s23, 0
      %p114 = por %p112, %p113
      %p115 = scmp.ne.s32.totalorder %s101, %s102
      %p116 = scmp.eq.s32.totalorder %s24, 7
      %p117 = por %p115, %p116
      %p119 = scmp.ne.s32.totalorder %s102, %s118
      %p120 = scmp.eq.s32.totalorder %s24, 0
      %p121 = por %p119, %p120
      %s122 = ssub.s32 %s26, %s33
      %p123 = scmp.eq.s32.totalorder %s122, 0
      %s125 = sadd.s32 %s124, 1
      %s126 = scalar_select %p123, %s124, %s125
      %p129 = pneg %p123
      %p130 = scmp.eq.s32.totalorder %s18, 7
      %p131 = por %p129, %p130
      %p132 = scmp.ne.s32.totalorder %s124, %s127
      %p133 = scmp.eq.s32.totalorder %s18, 0
      %p134 = por %p132, %p133
      %p135 = scmp.ne.s32.totalorder %s124, %s127
      %p136 = scmp.eq.s32.totalorder %s23, 7
      %p137 = por %p135, %p136
      %p138 = scmp.ne.s32.totalorder %s127, %s128
      %p139 = scmp.eq.s32.totalorder %s23, 0
      %p140 = por %p138, %p139
      %p141 = scmp.ne.s32.totalorder %s127, %s128
      %p142 = scmp.eq.s32.totalorder %s24, 7
      %p143 = por %p141, %p142
      %p145 = scmp.ne.s32.totalorder %s128, %s144
      %p146 = scmp.eq.s32.totalorder %s24, 0
      %p147 = por %p145, %p146
      %s148 = ssub.s32 %s25, %s37
      %p149 = scmp.eq.s32.totalorder %s148, 0
      %s151 = sadd.s32 %s150, 1
      %s152 = scalar_select %p149, %s150, %s151
      %p155 = pneg %p149
      %p156 = scmp.eq.s32.totalorder %s18, 7
      %p157 = por %p155, %p156
      %p158 = scmp.ne.s32.totalorder %s150, %s153
      %p159 = scmp.eq.s32.totalorder %s18, 0
      %p160 = por %p158, %p159
      %p161 = scmp.ne.s32.totalorder %s150, %s153
      %p162 = scmp.eq.s32.totalorder %s23, 7
      %p163 = por %p161, %p162
      %p164 = scmp.ne.s32.totalorder %s153, %s154
      %p165 = scmp.eq.s32.totalorder %s23, 0
      %p166 = por %p164, %p165
      %p167 = scmp.ne.s32.totalorder %s153, %s154
      %p168 = scmp.eq.s32.totalorder %s24, 7
      %p169 = por %p167, %p168
      %p171 = scmp.ne.s32.totalorder %s154, %s170
      %p172 = scmp.eq.s32.totalorder %s24, 0
      %p173 = por %p171, %p172
      %s174 = ssub.s32 %s25, %s37
      %s175 = ssub.s32 %s26, %s33
      %s176 = sor.u32 %s174, %s175
      %p177 = scmp.eq.s32.totalorder %s176, 0
      %s179 = sadd.s32 %s178, 1
      %s180 = scalar_select %p177, %s178, %s179
      %p183 = pneg %p177
      %p184 = scmp.eq.s32.totalorder %s18, 7
      %p185 = por %p183, %p184
      %p186 = scmp.ne.s32.totalorder %s178, %s181
      %p187 = scmp.eq.s32.totalorder %s18, 0
      %p188 = por %p186, %p187
      %p189 = scmp.ne.s32.totalorder %s178, %s181
      %p190 = scmp.eq.s32.totalorder %s23, 7
      %p191 = por %p189, %p190
      %p192 = scmp.ne.s32.totalorder %s181, %s182
      %p193 = scmp.eq.s32.totalorder %s23, 0
      %p194 = por %p192, %p193
      %p195 = scmp.ne.s32.totalorder %s181, %s182
      %p196 = scmp.eq.s32.totalorder %s24, 7
      %p197 = por %p195, %p196
      %p199 = scmp.ne.s32.totalorder %s182, %s198
      %p200 = scmp.eq.s32.totalorder %s24, 0
      %p201 = por %p199, %p200
      %p202 = scmp.le.s32.totalorder 1, %s18
      %p203 = scmp.lt.s32.totalorder %s18, 9
      %p204 = pnand %p202, %p203
      %p205 = pneg %p204
      // Predicated region
      $region9: #{multi_head_self_attention.3} parent=5 // pred_check
        _
      $region10: #{multi_head_self_attention.3} parent=5 // pred_check_branch
        %207 = sbr.rel (%p204) target = $region12
      $region11: #{multi_head_self_attention.3} parent=5 // pred_region
        %s208 = ssub.s32 %s18, 1
      $region12: #{multi_head_self_attention.3} parent=5 // pred_fallthru
        _
      %p209 = scmp.lt.s32.totalorder %s18, 8
      // Predicated region
      $region13: #{multi_head_self_attention.3} parent=5 // pred_check
        %p210 = pneg %p209
      $region14: #{multi_head_self_attention.3} parent=5 // pred_check_branch
        %212 = sbr.rel (%p210) target = $region16
      $region15: #{multi_head_self_attention.3} parent=5 // pred_region
        // Predicated region
        $region17: #{multi_head_self_attention.3} parent=15 // pred_check
          %p213 = pneg %p52
        $region18: #{multi_head_self_attention.3} parent=15 // pred_check_branch
          %215 = sbr.rel (%p213) target = $region20
        $region19: #{multi_head_self_attention.3} parent=15 // pred_region
          %p216 = scmp.lt.s32.totalorder %s25, 1
          %s217 = scalar_select %p216, %s25, 1
          %p218 = scmp.lt.s32.totalorder %s26, 3
          %s219 = scalar_select %p218, %s26, 3
          %s220 = smul.addr %s217, 4
          %s221 = sadd.s32 %s219, %s220
          %s222 = smul.addr %s221, 4
          %s223 = scalar_lea.vmem %s0, %s222
        $region20: #{multi_head_self_attention.3} parent=15 // pred_fallthru
          _
        // Predicated region
        $region21: #{multi_head_self_attention.3} parent=15 // pred_check
          %p224 = pneg %p80
        $region22: #{multi_head_self_attention.3} parent=15 // pred_check_branch
          %226 = sbr.rel (%p224) target = $region24
        $region23: #{multi_head_self_attention.3} parent=15 // pred_region
          %p227 = scmp.lt.s32.totalorder %s25, 1
          %s228 = scalar_select %p227, %s25, 1
          %p229 = scmp.lt.s32.totalorder %s26, 3
          %s230 = scalar_select %p229, %s26, 3
          %s231 = smul.addr %s228, 4
          %s232 = sadd.s32 %s230, %s231
          %s233 = smul.addr %s232, 4
          %s234 = scalar_lea.vmem %s1, %s233
        $region24: #{multi_head_self_attention.3} parent=15 // pred_fallthru
          _
        // Predicated region
        $region25: #{multi_head_self_attention.3} parent=15 // pred_check
          %p235 = pneg %p108
        $region26: #{multi_head_self_attention.3} parent=15 // pred_check_branch
          %237 = sbr.rel (%p235) target = $region28
        $region27: #{multi_head_self_attention.3} parent=15 // pred_region
          %p238 = scmp.lt.s32.totalorder %s25, 1
          %s239 = scalar_select %p238, %s25, 1
          %p240 = scmp.lt.s32.totalorder %s26, 3
          %s241 = scalar_select %p240, %s26, 3
          %s242 = smul.addr %s239, 4
          %s243 = sadd.s32 %s241, %s242
          %s244 = smul.addr %s243, 4
          %s245 = scalar_lea.vmem %s2, %s244
        $region28: #{multi_head_self_attention.3} parent=15 // pred_fallthru
          _
        // Predicated region
        $region29: #{multi_head_self_attention.3} parent=15 // pred_check
          %p246 = pneg %p134
        $region30: #{multi_head_self_attention.3} parent=15 // pred_check_branch
          %248 = sbr.rel (%p246) target = $region32
        $region31: #{multi_head_self_attention.3} parent=15 // pred_region
          %p249 = scmp.lt.s32.totalorder %s26, 3
          %s250 = scalar_select %p249, %s26, 3
          %s251 = smul.addr %s250, 4
          %s252 = scalar_lea.vmem %s3, %s251
        $region32: #{multi_head_self_attention.3} parent=15 // pred_fallthru
          _
      $region16: #{multi_head_self_attention.3} parent=5 // pred_fallthru
        _
      %p253 = scmp.le.s32.totalorder 1, %s18
      %p254 = scmp.lt.s32.totalorder %s18, 9
      %p255 = pnand %p253, %p254
      %p256 = pneg %p255
      // Predicated region
      $region33: #{multi_head_self_attention.3} parent=5 // pred_check
        _
      $region34: #{multi_head_self_attention.3} parent=5 // pred_check_branch
        %258 = sbr.rel (%p255) target = $region36
      $region35: #{multi_head_self_attention.3} parent=5 // pred_region
        %s259 = ssub.s32 %s18, 1
        %p260 = scmp.lt.s32.totalorder %s27, 1
        %s261 = scalar_select %p260, %s27, 1
        %p262 = scmp.lt.s32.totalorder %s28, 3
        %s263 = scalar_select %p262, %s28, 3
        %s264 = smul.addr %s261, 4
        %s265 = sadd.s32 %s263, %s264
        %s266 = smul.addr %s265, 4
        %s267 = scalar_lea.vmem %s0, %s266
        %p268 = pneg %p58
        %p269 = pneg %p55
        %p270 = scmp.lt.s32.totalorder %s27, 1
        %s271 = scalar_select %p270, %s27, 1
        %p272 = scmp.lt.s32.totalorder %s28, 3
        %s273 = scalar_select %p272, %s28, 3
        %s274 = smul.addr %s271, 4
        %s275 = sadd.s32 %s273, %s274
        %s276 = smul.addr %s275, 4
        %s277 = scalar_lea.vmem %s1, %s276
        %p278 = pneg %p86
        %p279 = pneg %p83
        %p280 = scmp.lt.s32.totalorder %s27, 1
        %s281 = scalar_select %p280, %s27, 1
        %p282 = scmp.lt.s32.totalorder %s28, 3
        %s283 = scalar_select %p282, %s28, 3
        %s284 = smul.addr %s281, 4
        %s285 = sadd.s32 %s283, %s284
        %s286 = smul.addr %s285, 4
        %s287 = scalar_lea.vmem %s2, %s286
        %p288 = pneg %p114
        %p289 = pneg %p111
        %p290 = scmp.lt.s32.totalorder %s28, 3
        %s291 = scalar_select %p290, %s28, 3
        %s292 = smul.addr %s291, 4
        %s293 = scalar_lea.vmem %s3, %s292
        %p294 = pneg %p140
        %p295 = pneg %p137
        %p296 = pneg %p166
        %p297 = pneg %p163
        %s298 = sand.u32 %s153, 1
        %s299 = scalar_lea.sflag [#allocation4], %s298
        %s300 = sand.u32 %s153, 1
        %s301 = smul.addr %s300, 8
        %s302 = scalar_lea.vmem [#allocation3], %s301
        %p303 = pneg %p194
        %p304 = pneg %p191
        %s305 = sand.u32 %s181, 1
        %s306 = scalar_lea.sflag [#allocation6], %s305
        %s307 = sand.u32 %s181, 1
        %s308 = smul.addr %s307, 8
        %s309 = scalar_lea.vmem [#allocation5], %s308
        %p310 = scmp.lt.s32.totalorder %s27, 1
        %s311 = scalar_select %p310, %s27, 1
        %p312 = scmp.lt.s32.totalorder %s28, 3
        %s313 = scalar_select %p312, %s28, 3
        %s314 = smul.addr %s311, 4
        %s315 = sadd.s32 %s313, %s314
        %s316 = smul.addr %s315, 4
        %s317 = scalar_lea.vmem %s0, %s316
        %p318 = scmp.lt.s32.totalorder %s27, 1
        %s319 = scalar_select %p318, %s27, 1
        %p320 = scmp.lt.s32.totalorder %s28, 3
        %s321 = scalar_select %p320, %s28, 3
        %s322 = smul.addr %s319, 4
        %s323 = sadd.s32 %s321, %s322
        %s324 = smul.addr %s323, 4
        %s325 = scalar_lea.vmem %s1, %s324
        %p326 = scmp.lt.s32.totalorder %s27, 1
        %s327 = scalar_select %p326, %s27, 1
        %p328 = scmp.lt.s32.totalorder %s28, 3
        %s329 = scalar_select %p328, %s28, 3
        %s330 = smul.addr %s327, 4
        %s331 = sadd.s32 %s329, %s330
        %s332 = smul.addr %s331, 4
        %s333 = scalar_lea.vmem %s2, %s332
        %p334 = scmp.lt.s32.totalorder %s28, 3
        %s335 = scalar_select %p334, %s28, 3
        %s336 = smul.addr %s335, 4
        %s337 = scalar_lea.vmem %s3, %s336
        %p339 = scmp.eq.s32.totalorder %s28, 0
        // Predicated region
        $region37: #{multi_head_self_attention.3} parent=35 // pred_check
          %p340 = pneg %p339
        $region38: #{multi_head_self_attention.3} parent=35 // pred_check_branch
          %342 = sbr.rel (%p340) target = $region40
        $region39: #{multi_head_self_attention.3} parent=35 // pred_region
          %vm343 = vcmask 261120
          %344 = vst.msk [vmem:[#allocation2] sm:$0xff] %vm343, 0.0
        $region40: #{multi_head_self_attention.3} parent=35 // pred_fallthru
          _
        %v345 = vld [vmem:[%s317] sm:$0xf]
        %v346 = vld [vmem:[%s325] sm:$0xf]
        %v347 = vld [vmem:[%s333] sm:$0xf]
        %vm348 = vcmask 64512
        %v350 = vsel %vm348, %v345, 0
        %v353 = vsel %vm348, %v346, 0
        %355 = vmatprep.subr.bf16.mxu0 0
        %356 = vmatpush1.bf16.xpose.msra.mxu0 %v353
        %357 = vmatprep.subr.bf16.mxu0 0
        %358 = vmatpush1.bf16.xpose.msra.mxu0 0
        %359 = vmatprep.subr.bf16.mxu0 0
        %360 = vmatpush1.bf16.xpose.msra.mxu0 0
        %361 = vmatprep.subr.bf16.mxu0 0
        %362 = vmatpush1.bf16.xpose.msra.mxu0 0
        %363 = vmatprep.subr.bf16.mxu0 0
        %364 = vmatpush1.bf16.xpose.msra.mxu0 0
        %365 = vmatprep.subr.bf16.mxu0 0
        %366 = vmatpush1.bf16.xpose.msra.mxu0 0
        %367 = vmatprep.subr.bf16.mxu0 0
        %368 = vmatpush1.bf16.xpose.msra.mxu0 0
        %369 = vmatprep.subr.bf16.mxu0 0
        %370 = vmatpush1.bf16.xpose.msra.mxu0 0
        %371 = vmatprep.subr.bf16.mxu0 0
        %372 = vmatpush1.bf16.xpose.msra.mxu0 0
        %373 = vmatprep.subr.bf16.mxu0 0
        %374 = vmatpush1.bf16.xpose.msra.mxu0 0
        %375 = vmatprep.subr.bf16.mxu0 0
        %376 = vmatpush1.bf16.xpose.msra.mxu0 0
        %377 = vmatprep.subr.bf16.mxu0 0
        %378 = vmatpush1.bf16.xpose.msra.mxu0 0
        %379 = vmatprep.subr.bf16.mxu0 0
        %380 = vmatpush1.bf16.xpose.msra.mxu0 0
        %381 = vmatprep.subr.bf16.mxu0 0
        %382 = vmatpush1.bf16.xpose.msra.mxu0 0
        %383 = vmatprep.subr.bf16.mxu0 0
        %384 = vmatpush1.bf16.xpose.msra.mxu0 0
        %385 = vmatprep.subr.bf16.mxu0 0
        %386 = vmatpush1.bf16.xpose.msra.mxu0 0
        %387 = vmatprep.mubr.bf16.mxu0 0
        %388 = vmatmul.mubr.bf16.gmra.mrb[0].mxu0 %v350
        %v389 = vpop.f32.mrb[0].mxu0
        %v390 = vadd.f32 0.0, %v389
        %v391 = vpop.f32.mrb[0].mxu0
        %v392 = vpop.f32.mrb[0].mxu0
        %v393 = vpop.f32.mrb[0].mxu0
        %394 = vdwg.mxu0
        %v395 = vsel %vm348, %v390, -inf
        %396 = vmax.xlane.f32.xlu0 %v395
        %v397 = vpop.xlane.xlu0 %396
        %v398 = vsub.f32 %v390, %v397
        %v399 = vmul.f32 %v398, 1.442695
        %v400 = vpow.pop %v399
        %v401 = vsel %vm348, %v400, 0.0
        %402 = vadd.xlane.f32.xlu0 %v401
        %v403 = vpop.xlane.xlu0 %402
        %v404 = vrcp.pop %v403
        %v405 = vmul.f32 %v400, %v404
        %406 = vst.msk [vmem:[%s309] sm:$0xff] %vm348, %v405
        %v407 = vpack.c.bf16 %v405, %v405
        %v409 = vsel %vm348, %v407, 0
        %vm411 = vcmask 1043456
        %v413 = vsel %vm411, %v347, 0
        %415 = vmatprep.subr.bf16.mxu0 0
        %416 = vmatpush1.bf16.msra.mxu0 %v413
        %417 = vmatprep.subr.bf16.mxu0 0
        %418 = vmatpush1.bf16.msra.mxu0 0
        %419 = vmatprep.subr.bf16.mxu0 0
        %420 = vmatpush1.bf16.msra.mxu0 0
        %421 = vmatprep.subr.bf16.mxu0 0
        %422 = vmatpush1.bf16.msra.mxu0 0
        %423 = vmatprep.subr.bf16.mxu0 0
        %424 = vmatpush1.bf16.msra.mxu0 0
        %425 = vmatprep.subr.bf16.mxu0 0
        %426 = vmatpush1.bf16.msra.mxu0 0
        %427 = vmatprep.subr.bf16.mxu0 0
        %428 = vmatpush1.bf16.msra.mxu0 0
        %429 = vmatprep.subr.bf16.mxu0 0
        %430 = vmatpush1.bf16.msra.mxu0 0
        %431 = vmatprep.subr.bf16.mxu0 0
        %432 = vmatpush1.bf16.msra.mxu0 0
        %433 = vmatprep.subr.bf16.mxu0 0
        %434 = vmatpush1.bf16.msra.mxu0 0
        %435 = vmatprep.subr.bf16.mxu0 0
        %436 = vmatpush1.bf16.msra.mxu0 0
        %437 = vmatprep.subr.bf16.mxu0 0
        %438 = vmatpush1.bf16.msra.mxu0 0
        %439 = vmatprep.subr.bf16.mxu0 0
        %440 = vmatpush1.bf16.msra.mxu0 0
        %441 = vmatprep.subr.bf16.mxu0 0
        %442 = vmatpush1.bf16.msra.mxu0 0
        %443 = vmatprep.subr.bf16.mxu0 0
        %444 = vmatpush1.bf16.msra.mxu0 0
        %445 = vmatprep.subr.bf16.mxu0 0
        %446 = vmatpush1.bf16.msra.mxu0 0
        %447 = vmatprep.mubr.bf16.mxu0 0
        %448 = vmatmul.mubr.bf16.gmra.mrb[0].mxu0 %v409
        %v449 = vpop.f32.mrb[0].mxu0
        %v450 = vadd.f32 0.0, %v449
        %v451 = vpop.f32.mrb[0].mxu0
        %v452 = vpop.f32.mrb[0].mxu0
        %v453 = vpop.f32.mrb[0].mxu0
        %454 = vdwg.mxu0
        %v455 = vld [vmem:[#allocation2] sm:$0xff]
        %v456 = vpack.c.bf16 %v450, %v450
        %v457 = vld [vmem:[%s337] sm:$0xf]
        %v459 = vsel %vm348, %v456, 0
        %v462 = vsel %vm411, %v457, 0
        %464 = vmatprep.subr.bf16.mxu0 0
        %465 = vmatpush1.bf16.msra.mxu0 %v462
        %466 = vmatprep.subr.bf16.mxu0 0
        %467 = vmatpush1.bf16.msra.mxu0 0
        %468 = vmatprep.subr.bf16.mxu0 0
        %469 = vmatpush1.bf16.msra.mxu0 0
        %470 = vmatprep.subr.bf16.mxu0 0
        %471 = vmatpush1.bf16.msra.mxu0 0
        %472 = vmatprep.subr.bf16.mxu0 0
        %473 = vmatpush1.bf16.msra.mxu0 0
        %474 = vmatprep.subr.bf16.mxu0 0
        %475 = vmatpush1.bf16.msra.mxu0 0
        %476 = vmatprep.subr.bf16.mxu0 0
        %477 = vmatpush1.bf16.msra.mxu0 0
        %478 = vmatprep.subr.bf16.mxu0 0
        %479 = vmatpush1.bf16.msra.mxu0 0
        %480 = vmatprep.subr.bf16.mxu0 0
        %481 = vmatpush1.bf16.msra.mxu0 0
        %482 = vmatprep.subr.bf16.mxu0 0
        %483 = vmatpush1.bf16.msra.mxu0 0
        %484 = vmatprep.subr.bf16.mxu0 0
        %485 = vmatpush1.bf16.msra.mxu0 0
        %486 = vmatprep.subr.bf16.mxu0 0
        %487 = vmatpush1.bf16.msra.mxu0 0
        %488 = vmatprep.subr.bf16.mxu0 0
        %489 = vmatpush1.bf16.msra.mxu0 0
        %490 = vmatprep.subr.bf16.mxu0 0
        %491 = vmatpush1.bf16.msra.mxu0 0
        %492 = vmatprep.subr.bf16.mxu0 0
        %493 = vmatpush1.bf16.msra.mxu0 0
        %494 = vmatprep.subr.bf16.mxu0 0
        %495 = vmatpush1.bf16.msra.mxu0 0
        %496 = vmatprep.mubr.bf16.mxu0 0
        %497 = vmatmul.mubr.bf16.gmra.mrb[0].mxu0 %v459
        %v498 = vpop.f32.mrb[0].mxu0
        %v499 = vadd.f32 0.0, %v498
        %v500 = vpop.f32.mrb[0].mxu0
        %v501 = vpop.f32.mrb[0].mxu0
        %v502 = vpop.f32.mrb[0].mxu0
        %503 = vdwg.mxu0
        %v504 = vadd.f32 %v455, %v499
        %vm505 = vcmask 261120
        %506 = vst.msk [vmem:[#allocation2] sm:$0xff] %vm505, %v504
        %p507 = scmp.eq.s32.totalorder %s28, 3
        // Predicated region
        $region41: #{multi_head_self_attention.3} parent=35 // pred_check
          %p508 = pneg %p507
        $region42: #{multi_head_self_attention.3} parent=35 // pred_check_branch
          %510 = sbr.rel (%p508) target = $region44
        $region43: #{multi_head_self_attention.3} parent=35 // pred_region
          %v511 = vld [vmem:[#allocation2] sm:$0xff]
          %512 = vst.msk [vmem:[%s302] sm:$0xff] %vm505, %v511
        $region44: #{multi_head_self_attention.3} parent=35 // pred_fallthru
          _
        %s513 = sand.u32 %s153, 1
        %s514 = scalar_lea.sflag [#allocation4], %s513
        %s515 = sand.u32 %s153, 1
        %s516 = smul.addr %s515, 8
        %s517 = scalar_lea.vmem [#allocation3], %s516
        %s518 = sand.u32 %s181, 1
        %s519 = scalar_lea.sflag [#allocation6], %s518
        %s520 = sand.u32 %s181, 1
        %s521 = smul.addr %s520, 8
        %s522 = scalar_lea.vmem [#allocation5], %s521
        // Predicated region
        $region45: #{multi_head_self_attention.3} parent=35 // pred_check
          %p523 = pneg %p163
        $region46: #{multi_head_self_attention.3} parent=35 // pred_check_branch
          %525 = sbr.rel (%p523) target = $region48
        $region47: #{multi_head_self_attention.3} parent=35 // pred_region
          %s527 = ssub.s32 128, 128
          %528 = vsyncadd %s514, %s527
          %s529 = smul.addr %s27, 128
          %s530 = scalar_lea.hbm %s4, %s529
          %s532 = sshll.u32 %s517, 4
          %s533 = int_to_ptr.vmem [resolvable:$true] %s532
          %535 = dma.vmem_to_hbm [thread:$0]  %s533, 128, %s530, %s514
        $region48: #{multi_head_self_attention.3} parent=35 // pred_fallthru
          _
        // Predicated region
        $region49: #{multi_head_self_attention.3} parent=35 // pred_check
          %p536 = pneg %p191
        $region50: #{multi_head_self_attention.3} parent=35 // pred_check_branch
          %538 = sbr.rel (%p536) target = $region52
        $region51: #{multi_head_self_attention.3} parent=35 // pred_region
          %s540 = ssub.s32 128, 128
          %541 = vsyncadd %s519, %s540
          %s542 = smul.addr %s27, 4
          %s543 = sadd.s32 %s28, %s542
          %s544 = smul.addr %s543, 128
          %s545 = scalar_lea.hbm %s5, %s544
          %s547 = sshll.u32 %s522, 4
          %s548 = int_to_ptr.vmem [resolvable:$true] %s547
          %550 = dma.vmem_to_hbm [thread:$0]  %s548, 128, %s545, %s519
        $region52: #{multi_head_self_attention.3} parent=35 // pred_fallthru
          _
      $region36: #{multi_head_self_attention.3} parent=5 // pred_fallthru
        _
      %p551 = scmp.le.s32.totalorder 2, %s18
      // Predicated region
      $region53: #{multi_head_self_attention.3} parent=5 // pred_check
        %p552 = pneg %p551
      $region54: #{multi_head_self_attention.3} parent=5 // pred_check_branch
        %554 = sbr.rel (%p552) target = $region56
      $region55: #{multi_head_self_attention.3} parent=5 // pred_region
        %s555 = ssub.s32 %s18, 2
        // Predicated region
        $region57: #{multi_head_self_attention.3} parent=55 // pred_check
          %p556 = pneg %p169
        $region58: #{multi_head_self_attention.3} parent=55 // pred_check_branch
          %558 = sbr.rel (%p556) target = $region60
        $region59: #{multi_head_self_attention.3} parent=55 // pred_region
          %s559 = sand.u32 %s154, 1
          %s560 = scalar_lea.sflag [#allocation4], %s559
          %s561 = sand.u32 %s154, 1
          %s562 = smul.addr %s561, 8
          %s563 = scalar_lea.vmem [#allocation3], %s562
          %564 = dma.done %s560, 128
        $region60: #{multi_head_self_attention.3} parent=55 // pred_fallthru
          _
        // Predicated region
        $region61: #{multi_head_self_attention.3} parent=55 // pred_check
          %p565 = pneg %p197
        $region62: #{multi_head_self_attention.3} parent=55 // pred_check_branch
          %567 = sbr.rel (%p565) target = $region64
        $region63: #{multi_head_self_attention.3} parent=55 // pred_region
          %s568 = sand.u32 %s182, 1
          %s569 = scalar_lea.sflag [#allocation6], %s568
          %s570 = sand.u32 %s182, 1
          %s571 = smul.addr %s570, 8
          %s572 = scalar_lea.vmem [#allocation5], %s571
          %573 = dma.done %s569, 128
        $region64: #{multi_head_self_attention.3} parent=55 // pred_fallthru
          _
      $region56: #{multi_head_self_attention.3} parent=5 // pred_fallthru
        _
    $region6: #{multi_head_self_attention.3} parent=1 // loop_footer
      %s22 = sadd.s32 1, %s18
    $region7: #{multi_head_self_attention.3} parent=1 // loop_footer_branch
      %17 = sbr.rel target = $region3
    $region8: #{multi_head_self_attention.3} parent=1 // loop_exit
      _
    %574 = vsyncpa [#allocation4], 1
    %s575 = scalar_lea.sflag [#allocation4], 1
    %576 = vsyncpa %s575, 1
    %577 = vsyncpa [#allocation6], 1
    %s578 = scalar_lea.sflag [#allocation6], 1
    %579 = vsyncpa %s578, 1

</llo_original>
